<compile_context>
chip_gen: v7x
topology: tpu7x:2x2x1
jax: 0.10.0
libtpu: 0.0.40
codegen_flags: <defaults>
</compile_context>

<pallas_src>
import jax
import jax.numpy as jnp
from jax.experimental import pallas as pl
from jax.experimental.pallas import tpu as pltpu


def _round_up(n, m):
    return ((n + m - 1) // m) * m


def _choose_tb(batch, block_b):
    """Batch-tile size: multiple of 8, >= 2 grid steps when possible, minimal padding waste."""
    b8 = _round_up(batch, 8)
    tb = min(max(8, _round_up(block_b, 8)), b8)
    if b8 >= 16:                                    # keep both v7x TensorCores / pipeline busy
        tb = min(tb, max(8, (b8 // 2) // 8 * 8))
    for cand in range(tb, max(8, tb // 2) - 1, -8):  # prefer a tile dividing the padded batch
        if b8 % cand == 0:
            return cand
    return tb


def attentive_pool_kernel(x_ref, len_ref, w1_ref, b1_ref, w2_ref, out_ref):
    rows, h_dim = x_ref.shape            # rows = TB * Lp (batch tile, flattened over seq)
    tb = out_ref.shape[0]
    lp = rows // tb

    x = x_ref[...]                                            # (TB*Lp, H) compute dtype (bf16)

    # ---- attention MLP: ONE fused MXU matmul over the whole batch tile, f32 accumulation ----
    h = jnp.tanh(
        jnp.dot(x, w1_ref[...], preferred_element_type=jnp.float32) + b1_ref[...]
    )                                                         # (TB*Lp, H) f32

    # ---- second Linear (H -> 1); b2 dropped (softmax shift-invariance => exact no-op) ----
    # (If a bundle dump ever shows the XLU lane-reduce binding, route this through the MXU as
    #  h @ w2 with w2 padded to (H, 8); the MXU has large slack here.  Low priority.)
    h3 = h.reshape(tb, lp, h_dim)                             # copy-free: f32 and lp % 8 == 0
    e = jnp.sum(h3 * w2_ref[...], axis=-1)                    # (TB, Lp) f32 — lane-dense path

    # ---- prefix mask from per-row lengths + masked softmax, all on the 2-D (TB, Lp) layout ----
    pos = jax.lax.broadcasted_iota(jnp.int32, (tb, lp), 1)
    e = jnp.where(pos < len_ref[...], e, jnp.float32(-1e20))  # single select
    e_max = jnp.max(e, axis=-1, keepdims=True)                # (TB, 1)
    p = jnp.exp(e - e_max)                                    # (TB, Lp)
    a = p * pl.reciprocal(jnp.sum(p, axis=-1, keepdims=True), approx=True)

    # ---- attention-weighted pooling -> lane/sublane-dense (TB, H) store ----
    x_f32 = x.astype(jnp.float32)                             # upcast once; pooling stays f32
    x3 = x_f32.reshape(tb, lp, h_dim)                         # copy-free (f32, lp % 8 == 0)
    out_ref[...] = jnp.sum(a[:, :, None] * x3, axis=1).astype(out_ref.dtype)


def attentive_pooling(x, mask, w1, b1, w2, b2=None, *, block_b=512,
                      compute_dtype=jnp.bfloat16):
    """Attentive pooling.  x: (B, L, H); mask: (B, L) bool LEFT-ALIGNED prefix mask.
    Returns (B, H) in x.dtype.

    compute_dtype: dtype of x / W1 across the pallas_call boundary and of the MXU operands
    (bf16 recommended on all of v5e/v6e/v7x); accumulation + elementwise math stay f32.
    b2 is accepted for interface parity but unused (softmax shift-invariance).
    """
    B, L, H = x.shape

    # Per-row valid lengths.  Hard contract: mask must equal (arange(L) < lengths[:, None]).
    lengths = jnp.sum(mask.astype(jnp.int32), axis=1)

    lp = _round_up(L, 8)                 # keeps the in-kernel f32 reshapes copy-free
    tb = _choose_tb(B, block_b)
    b_pad = _round_up(B, tb)

    xc = x.astype(compute_dtype)         # cast once outside the kernel (free if x already bf16)
    if lp != L:
        xc = jnp.pad(xc, ((0, 0), (0, lp - L), (0, 0)))        # padded seq positions get masked
    if b_pad != B:
        # Dummy batch rows: "fully valid" zeros -> uniform softmax over zeros -> zero output.
        xc = jnp.pad(xc, ((0, b_pad - B), (0, 0), (0, 0)))
        lengths = jnp.pad(lengths, (0, b_pad - B), constant_values=L)

    x_flat = xc.reshape(b_pad * lp, H)                          # free relabel in row-major HBM
    lens2d = lengths.reshape(b_pad, 1).astype(jnp.int32)
    w1_c = w1.astype(compute_dtype)
    b1_2d = b1.reshape(1, H).astype(jnp.float32)
    w2_2d = w2.reshape(1, H).astype(jnp.float32)

    const = lambda i: (0, 0)
    out = pl.pallas_call(
        attentive_pool_kernel,
        out_shape=jax.ShapeDtypeStruct((b_pad, H), x.dtype),
        grid=(b_pad // tb,),
        in_specs=[
            pl.BlockSpec((tb * lp, H), lambda i: (i, 0)),                   # x (flattened)
            pl.BlockSpec((tb, 1), lambda i: (i, 0)),                        # per-row lengths
            pl.BlockSpec((H, H), const, pipeline_mode=pl.Buffered(1)),      # W1 (grid-invariant)
            pl.BlockSpec((1, H), const, pipeline_mode=pl.Buffered(1)),      # b1
            pl.BlockSpec((1, H), const, pipeline_mode=pl.Buffered(1)),      # w2
        ],
        out_specs=pl.BlockSpec((tb, H), lambda i: (i, 0)),
        compiler_params=pltpu.CompilerParams(
            dimension_semantics=("parallel",),        # shard batch tiles across v7x TCs
            vmem_limit_bytes=32 * 1024 * 1024,        # lift v5e's 16 MiB scoped default
        ),
    )(x_flat, lens2d, w1_c, b1_2d, w2_2d)

    return out[:B]


def attentive_pooling_ref(x, mask, w1, b1, w2, b2, compute_dtype=jnp.float32):
    """Pure-JAX reference mirroring the PyTorch forward (b2 included; it is a no-op).
    compute_dtype mirrors the kernel contract: x/W1 rounded to compute_dtype, f32 accumulation."""
    xc = x.astype(compute_dtype)
    h = jnp.tanh(
        jnp.einsum("blh,hk->blk", xc, w1.astype(compute_dtype),
                   preferred_element_type=jnp.float32) + b1)
    e = jnp.einsum("blh,h->bl", h, w2) + b2                            # (B, L)
    e = e + (1.0 - mask.astype(jnp.float32)) * (-1e20)
    a = jax.nn.softmax(e, axis=1)                                      # (B, L)
    return jnp.einsum("bl,blh->bh", a, xc.astype(jnp.float32))         # (B, H)


if __name__ == "__main__":
    # Small deterministic example. hidden_size = output_size = 128 (identity mapping head).
    B, L, H = 32, 8, 128
    key = jax.random.PRNGKey(0)
    kx, kw1, kb1, kw2, kb2, kl = jax.random.split(key, 6)

    x = jax.random.normal(kx, (B, L, H), dtype=jnp.float32)
    lengths = jax.random.randint(kl, (B,), 1, L + 1)                   # valid prefix lengths
    mask = jnp.arange(L)[None, :] < lengths[:, None]                   # (B, L) bool prefix mask

    w1 = jax.random.normal(kw1, (H, H), dtype=jnp.float32) * (1.0 / jnp.sqrt(H))
    b1 = jax.random.normal(kb1, (H,), dtype=jnp.float32) * 0.01
    w2 = jax.random.normal(kw2, (H,), dtype=jnp.float32) * (1.0 / jnp.sqrt(H))
    b2 = jax.random.normal(kb2, (1,), dtype=jnp.float32) * 0.01

    ref_f32 = attentive_pooling_ref(x, mask, w1, b1, w2, b2)

    # 1) f32 operand path (exact module semantics; same kernel, f32 across the boundary).
    out_f32 = jax.block_until_ready(
        attentive_pooling(x, mask, w1, b1, w2, b2, compute_dtype=jnp.float32))
    assert out_f32.shape == (B, H)
    assert jnp.allclose(out_f32, ref_f32, atol=5e-3, rtol=5e-3), (
        f"f32 path max abs diff = {jnp.max(jnp.abs(out_f32 - ref_f32))}")

    # 2) Default bf16-operand path (recommended on v5e/v6e/v7x; f32 accumulation).
    out_bf16 = jax.block_until_ready(attentive_pooling(x, mask, w1, b1, w2, b2))
    ref_bf16 = attentive_pooling_ref(x, mask, w1, b1, w2, b2, compute_dtype=jnp.bfloat16)
    assert jnp.allclose(out_bf16, ref_bf16, atol=1e-2, rtol=1e-2), (
        f"bf16 path vs matched ref max abs diff = {jnp.max(jnp.abs(out_bf16 - ref_bf16))}")
    assert jnp.allclose(out_bf16, ref_f32, atol=5e-2, rtol=5e-2), (
        f"bf16 path vs f32 ref max abs diff = {jnp.max(jnp.abs(out_bf16 - ref_f32))}")

    # 3) Ragged batch + non-multiple-of-8 sequence length (exercises both padding paths).
    B2, L2 = 5, 6
    x2 = x[:B2, :L2, :]
    lengths2 = jax.random.randint(jax.random.PRNGKey(1), (B2,), 1, L2 + 1)
    mask2 = jnp.arange(L2)[None, :] < lengths2[:, None]
    out2 = jax.block_until_ready(attentive_pooling(x2, mask2, w1, b1, w2, b2))
    ref2 = attentive_pooling_ref(x2, mask2, w1, b1, w2, b2, compute_dtype=jnp.bfloat16)
    assert out2.shape == (B2, H)
    assert jnp.allclose(out2, ref2, atol=1e-2, rtol=1e-2), (
        f"ragged path max abs diff = {jnp.max(jnp.abs(out2 - ref2))}")

    print("KERNEL_OK")
</pallas_src>

<mosaic_0001>
module attributes {stable_mosaic.version = 11 : i64} {
  func.func @attentive_pool_kernel(%arg0: i32, %arg1: memref<128x128xf32, #tpu.memory_space<vmem>>, %arg2: memref<16x1xi32, #tpu.memory_space<vmem>>, %arg3: memref<128x128xf32, #tpu.memory_space<vmem>>, %arg4: memref<1x128xf32, #tpu.memory_space<vmem>>, %arg5: memref<1x128xf32, #tpu.memory_space<vmem>>, %arg6: memref<16x128xf32, #tpu.memory_space<vmem>>) attributes {dimension_semantics = [#tpu.dimension_semantics<parallel>], iteration_bounds = array<i64: 2>, scalar_prefetch = 0 : i64, scratch_operands = 0 : i64, tpu.core_type = #tpu.core_type<tc>, window_params = [{transform_indices = @transform_0, window_bounds = array<i64: 128, 128>}, {transform_indices = @transform_1, window_bounds = array<i64: 16, 1>}, {pipeline_mode = #tpu.pipeline_mode<synchronous>, transform_indices = @transform_2, window_bounds = array<i64: 128, 128>}, {pipeline_mode = #tpu.pipeline_mode<synchronous>, transform_indices = @transform_3, window_bounds = array<i64: 1, 128>}, {pipeline_mode = #tpu.pipeline_mode<synchronous>, transform_indices = @transform_4, window_bounds = array<i64: 1, 128>}, {transform_indices = @transform_5, window_bounds = array<i64: 16, 128>}]} {
    %c0 = arith.constant 0 : index
    %c0_0 = arith.constant 0 : index
    %0 = vector.load %arg1[%c0, %c0_0] : memref<128x128xf32, #tpu.memory_space<vmem>>, vector<128x128xf32>
    %c0_1 = arith.constant 0 : index
    %c0_2 = arith.constant 0 : index
    %1 = vector.load %arg3[%c0_1, %c0_2] : memref<128x128xf32, #tpu.memory_space<vmem>>, vector<128x128xf32>
    %cst = arith.constant dense<0.000000e+00> : vector<128x128xf32>
    %2 = tpu.matmul %0, %1, %cst {dimension_numbers = #tpu.dot_dimension_numbers<[1], [0], [0], [1], [0, 0, 1, 1], [], []>} : vector<128x128xf32>, vector<128x128xf32>, vector<128x128xf32> -> vector<128x128xf32>
    %c0_3 = arith.constant 0 : index
    %c0_4 = arith.constant 0 : index
    %3 = vector.load %arg4[%c0_3, %c0_4] : memref<1x128xf32, #tpu.memory_space<vmem>>, vector<1x128xf32>
    %4 = vector.broadcast %3 : vector<1x128xf32> to vector<128x128xf32>
    %5 = arith.addf %2, %4 : vector<128x128xf32>
    %6 = math.tanh %5 : vector<128x128xf32>
    %7 = vector.shape_cast %6 : vector<128x128xf32> to vector<16x8x128xf32>
    %c0_5 = arith.constant 0 : index
    %c0_6 = arith.constant 0 : index
    %8 = vector.load %arg5[%c0_5, %c0_6] : memref<1x128xf32, #tpu.memory_space<vmem>>, vector<1x128xf32>
    %9 = vector.shape_cast %8 : vector<1x128xf32> to vector<1x1x128xf32>
    %10 = vector.broadcast %9 : vector<1x1x128xf32> to vector<16x8x128xf32>
    %11 = arith.mulf %7, %10 : vector<16x8x128xf32>
    %cst_7 = arith.constant dense<0.000000e+00> : vector<16x8xf32>
    %12 = vector.multi_reduction <add>, %11, %cst_7 [2] : vector<16x8x128xf32> to vector<16x8xf32>
    %13 = tpu.iota {dimensions = array<i32: 1>} : vector<16x8xi32>
    %c0_8 = arith.constant 0 : index
    %c0_9 = arith.constant 0 : index
    %14 = vector.load %arg2[%c0_8, %c0_9] : memref<16x1xi32, #tpu.memory_space<vmem>>, vector<16x1xi32>
    %15 = vector.broadcast %14 : vector<16x1xi32> to vector<16x8xi32>
    %16 = arith.cmpi slt, %13, %15 : vector<16x8xi32>
    %cst_10 = arith.constant -1.000000e+20 : f32
    %17 = vector.broadcast %cst_10 : f32 to vector<16x8xf32>
    %18 = arith.select %16, %12, %17 : vector<16x8xi1>, vector<16x8xf32>
    %cst_11 = arith.constant dense<0xFF800000> : vector<16xf32>
    %19 = vector.multi_reduction <maximumf>, %18, %cst_11 [1] : vector<16x8xf32> to vector<16xf32>
    %20 = vector.shape_cast %19 : vector<16xf32> to vector<16x1xf32>
    %21 = vector.broadcast %20 : vector<16x1xf32> to vector<16x8xf32>
    %22 = arith.subf %18, %21 : vector<16x8xf32>
    %23 = math.exp %22 : vector<16x8xf32>
    %cst_12 = arith.constant dense<0.000000e+00> : vector<16xf32>
    %24 = vector.multi_reduction <add>, %23, %cst_12 [1] : vector<16x8xf32> to vector<16xf32>
    %25 = vector.shape_cast %24 : vector<16xf32> to vector<16x1xf32>
    %26 = tpu.reciprocal %25 {approx = true} : vector<16x1xf32> -> vector<16x1xf32>
    %27 = vector.broadcast %26 : vector<16x1xf32> to vector<16x8xf32>
    %28 = arith.mulf %23, %27 : vector<16x8xf32>
    %29 = vector.shape_cast %0 : vector<128x128xf32> to vector<16x8x128xf32>
    %30 = vector.shape_cast %28 : vector<16x8xf32> to vector<16x8x1xf32>
    %31 = vector.broadcast %30 : vector<16x8x1xf32> to vector<16x8x128xf32>
    %32 = arith.mulf %31, %29 : vector<16x8x128xf32>
    %cst_13 = arith.constant dense<0.000000e+00> : vector<16x128xf32>
    %33 = vector.multi_reduction <add>, %32, %cst_13 [1] : vector<16x8x128xf32> to vector<16x128xf32>
    %c0_14 = arith.constant 0 : index
    %c0_15 = arith.constant 0 : index
    %34 = vector.load %arg6[%c0_14, %c0_15] : memref<16x128xf32, #tpu.memory_space<vmem>>, vector<16x128xf32>
    tpu.vector_store %arg6[%c0_14, %c0_15], %33 {strides = array<i32>} : memref<16x128xf32, #tpu.memory_space<vmem>>, vector<16x128xf32>,
    return
  }
  func.func @transform_0(%arg0: i32) -> (i32, i32) {
    %c0_i32 = arith.constant 0 : i32
    %c0_i32_0 = arith.constant 0 : i32
    return %arg0, %c0_i32 : i32, i32
  }
  func.func @transform_1(%arg0: i32) -> (i32, i32) {
    %c0_i32 = arith.constant 0 : i32
    %c0_i32_0 = arith.constant 0 : i32
    return %arg0, %c0_i32 : i32, i32
  }
  func.func @transform_2(%arg0: i32) -> (i32, i32) {
    %c0_i32 = arith.constant 0 : i32
    %c0_i32_0 = arith.constant 0 : i32
    %c0_i32_1 = arith.constant 0 : i32
    return %c0_i32, %c0_i32_0 : i32, i32
  }
  func.func @transform_3(%arg0: i32) -> (i32, i32) {
    %c0_i32 = arith.constant 0 : i32
    %c0_i32_0 = arith.constant 0 : i32
    %c0_i32_1 = arith.constant 0 : i32
    return %c0_i32, %c0_i32_0 : i32, i32
  }
  func.func @transform_4(%arg0: i32) -> (i32, i32) {
    %c0_i32 = arith.constant 0 : i32
    %c0_i32_0 = arith.constant 0 : i32
    %c0_i32_1 = arith.constant 0 : i32
    return %c0_i32, %c0_i32_0 : i32, i32
  }
  func.func @transform_5(%arg0: i32) -> (i32, i32) {
    %c0_i32 = arith.constant 0 : i32
    %c0_i32_0 = arith.constant 0 : i32
    return %arg0, %c0_i32 : i32, i32
  }
}

</mosaic_0001>

<llo_original>
// kernel: tpu_custom_call.1
$region0: #{tpu_custom_call.1}
  #allocation0 [shape = 'u32[]', space=smem, size = 0x4, offset = 0x4, fixed_abs, tag = 'smem constant byte address 0x4 - core index']
  #allocation1 [shape = 'u32[144,128]{1,0:T(1,128)}', space=vmem, size = 0x12000, scoped, tag = 'internal scratch']
  %s0 = inlined_call_operand.hbm [shape: f32[256,128], index: 0, kind: input, shape index: {}]
  %s1 = inlined_call_operand.vmem [shape: s32[32,1], index: 1, kind: input, shape index: {}]
  %s2 = inlined_call_operand.hbm [shape: f32[128,128], index: 2, kind: input, shape index: {}]
  %s3 = inlined_call_operand.vmem [shape: f32[1,128], index: 3, kind: input, shape index: {}]
  %s4 = inlined_call_operand.vmem [shape: f32[1,128], index: 4, kind: input, shape index: {}]
  %s5 = inlined_call_operand.hbm [shape: f32[32,128], index: 5, kind: output, shape index: {}]
  %s6 = sld [smem:[#allocation0]]
  $region61: #{tpu_custom_call.1} parent=0
    _
  %s8 = ssub.s32 1, %s6
  %s9 = scalar_select 0, %s8, %s6
  $region1: #{tpu_custom_call.1} parent=0
    #allocation2 [shape = 'u8[131072]{0}', space=vmem, size = 0x20000, scoped, tag = 'input window, operand 0']
    #allocation3 [shape = 's32[2]{0}', space=sflag, size = 0x8, scoped, tag = 'scoped memory for tpu_custom_call.1']
    #allocation4 [shape = 's32[2]{0}', space=sflag, size = 0x8, scoped, tag = 'scoped memory for tpu_custom_call.1']
    #allocation5 [shape = 'u8[65536]{0}', space=vmem, size = 0x10000, scoped, tag = 'input window, operand 2, single buffered']
    #allocation6 [shape = 's32[1]{0}', space=sflag, size = 0x4, scoped, tag = 'scoped memory for tpu_custom_call.1']
    #allocation7 [shape = 'u8[16384]{0}', space=vmem, size = 0x4000, scoped, tag = 'output window, operand 0']
    %10 = vsyncpa [#allocation3], 0
    %s11 = scalar_lea.sflag [#allocation3], 1
    %12 = vsyncpa %s11, 0
    %13 = vsyncpa [#allocation6], 0
    %14 = vsyncpa [#allocation4], 0
    %s15 = scalar_lea.sflag [#allocation4], 1
    %16 = vsyncpa %s15, 0
    loop: start=0, step=1, limit=4
    $region2: #{tpu_custom_call.1} parent=1 // loop_pre_header
      _
    $region3: #{tpu_custom_call.1} parent=1 // loop_header
      %s18 = sphi 0, %s22
      %p19 = scmp.ge.s32.totalorder %s18, 4
      %s28 = sphi 0, %s30
      %s31 = sphi 0, %s28
      %s32 = sphi 0, %s31
      %s48 = sphi 0, %s32
      %s54 = sphi 0, %s56
      %s57 = sphi 0, %s54
      %s58 = sphi 0, %s57
      %s74 = sphi 0, %s58
      %s78 = sphi 0, %s78
      %s80 = sphi 0, %s78
      %s81 = sphi 0, %s80
      %s95 = sphi 0, %s81
      %s99 = sphi 0, %s99
      %s101 = sphi 0, %s99
      %s102 = sphi 0, %s101
      %s116 = sphi 0, %s102
      %s120 = sphi 0, %s120
      %s122 = sphi 0, %s120
      %s123 = sphi 0, %s122
      %s137 = sphi 0, %s123
      %s143 = sphi 0, %s145
      %s146 = sphi 0, %s143
      %s147 = sphi 0, %s146
      %s163 = sphi 0, %s147
    $region4: #{tpu_custom_call.1} parent=1 // loop_header_branch
      %21 = sbr.rel (%p19) target = $region8
    $region5: #{tpu_custom_call.1} parent=1 // loop_body
      %s23 = ssub.s32 %s18, 1
      %s24 = ssub.s32 %s18, 2
      %s25 = sadd.s32 %s18, 1
      %s26 = ssub.s32 %s18, %s25
      %p27 = scmp.eq.s32.totalorder %s26, 0
      %s29 = sadd.s32 %s28, 1
      %s30 = scalar_select %p27, %s28, %s29
      %p33 = pneg %p27
      %p34 = scmp.eq.s32.totalorder %s18, 1
      %p35 = por %p33, %p34
      %p36 = scmp.ne.s32.totalorder %s28, %s31
      %p37 = scmp.eq.s32.totalorder %s18, 0
      %p38 = por %p36, %p37
      %p39 = scmp.ne.s32.totalorder %s28, %s31
      %p40 = scmp.eq.s32.totalorder %s23, 1
      %p41 = por %p39, %p40
      %p42 = scmp.ne.s32.totalorder %s31, %s32
      %p43 = scmp.eq.s32.totalorder %s23, 0
      %p44 = por %p42, %p43
      %p45 = scmp.ne.s32.totalorder %s31, %s32
      %p46 = scmp.eq.s32.totalorder %s24, 1
      %p47 = por %p45, %p46
      %p49 = scmp.ne.s32.totalorder %s32, %s48
      %p50 = scmp.eq.s32.totalorder %s24, 0
      %p51 = por %p49, %p50
      %s52 = ssub.s32 %s18, %s25
      %p53 = scmp.eq.s32.totalorder %s52, 0
      %s55 = sadd.s32 %s54, 1
      %s56 = scalar_select %p53, %s54, %s55
      %p59 = pneg %p53
      %p60 = scmp.eq.s32.totalorder %s18, 1
      %p61 = por %p59, %p60
      %p62 = scmp.ne.s32.totalorder %s54, %s57
      %p63 = scmp.eq.s32.totalorder %s18, 0
      %p64 = por %p62, %p63
      %p65 = scmp.ne.s32.totalorder %s54, %s57
      %p66 = scmp.eq.s32.totalorder %s23, 1
      %p67 = por %p65, %p66
      %p68 = scmp.ne.s32.totalorder %s57, %s58
      %p69 = scmp.eq.s32.totalorder %s23, 0
      %p70 = por %p68, %p69
      %p71 = scmp.ne.s32.totalorder %s57, %s58
      %p72 = scmp.eq.s32.totalorder %s24, 1
      %p73 = por %p71, %p72
      %p75 = scmp.ne.s32.totalorder %s58, %s74
      %p76 = scmp.eq.s32.totalorder %s24, 0
      %p77 = por %p75, %p76
      %s79 = sadd.s32 %s78, 1
      %p82 = scmp.eq.s32.totalorder %s18, 1
      %p83 = scmp.ne.s32.totalorder %s78, %s80
      %p84 = scmp.eq.s32.totalorder %s18, 0
      %p85 = por %p83, %p84
      %p86 = scmp.ne.s32.totalorder %s78, %s80
      %p87 = scmp.eq.s32.totalorder %s23, 1
      %p88 = por %p86, %p87
      %p89 = scmp.ne.s32.totalorder %s80, %s81
      %p90 = scmp.eq.s32.totalorder %s23, 0
      %p91 = por %p89, %p90
      %p92 = scmp.ne.s32.totalorder %s80, %s81
      %p93 = scmp.eq.s32.totalorder %s24, 1
      %p94 = por %p92, %p93
      %p96 = scmp.ne.s32.totalorder %s81, %s95
      %p97 = scmp.eq.s32.totalorder %s24, 0
      %p98 = por %p96, %p97
      %s100 = sadd.s32 %s99, 1
      %p103 = scmp.eq.s32.totalorder %s18, 1
      %p104 = scmp.ne.s32.totalorder %s99, %s101
      %p105 = scmp.eq.s32.totalorder %s18, 0
      %p106 = por %p104, %p105
      %p107 = scmp.ne.s32.totalorder %s99, %s101
      %p108 = scmp.eq.s32.totalorder %s23, 1
      %p109 = por %p107, %p108
      %p110 = scmp.ne.s32.totalorder %s101, %s102
      %p111 = scmp.eq.s32.totalorder %s23, 0
      %p112 = por %p110, %p111
      %p113 = scmp.ne.s32.totalorder %s101, %s102
      %p114 = scmp.eq.s32.totalorder %s24, 1
      %p115 = por %p113, %p114
      %p117 = scmp.ne.s32.totalorder %s102, %s116
      %p118 = scmp.eq.s32.totalorder %s24, 0
      %p119 = por %p117, %p118
      %s121 = sadd.s32 %s120, 1
      %p124 = scmp.eq.s32.totalorder %s18, 1
      %p125 = scmp.ne.s32.totalorder %s120, %s122
      %p126 = scmp.eq.s32.totalorder %s18, 0
      %p127 = por %p125, %p126
      %p128 = scmp.ne.s32.totalorder %s120, %s122
      %p129 = scmp.eq.s32.totalorder %s23, 1
      %p130 = por %p128, %p129
      %p131 = scmp.ne.s32.totalorder %s122, %s123
      %p132 = scmp.eq.s32.totalorder %s23, 0
      %p133 = por %p131, %p132
      %p134 = scmp.ne.s32.totalorder %s122, %s123
      %p135 = scmp.eq.s32.totalorder %s24, 1
      %p136 = por %p134, %p135
      %p138 = scmp.ne.s32.totalorder %s123, %s137
      %p139 = scmp.eq.s32.totalorder %s24, 0
      %p140 = por %p138, %p139
      %s141 = ssub.s32 %s18, %s25
      %p142 = scmp.eq.s32.totalorder %s141, 0
      %s144 = sadd.s32 %s143, 1
      %s145 = scalar_select %p142, %s143, %s144
      %p148 = pneg %p142
      %p149 = scmp.eq.s32.totalorder %s18, 1
      %p150 = por %p148, %p149
      %p151 = scmp.ne.s32.totalorder %s143, %s146
      %p152 = scmp.eq.s32.totalorder %s18, 0
      %p153 = por %p151, %p152
      %p154 = scmp.ne.s32.totalorder %s143, %s146
      %p155 = scmp.eq.s32.totalorder %s23, 1
      %p156 = por %p154, %p155
      %p157 = scmp.ne.s32.totalorder %s146, %s147
      %p158 = scmp.eq.s32.totalorder %s23, 0
      %p159 = por %p157, %p158
      %p160 = scmp.ne.s32.totalorder %s146, %s147
      %p161 = scmp.eq.s32.totalorder %s24, 1
      %p162 = por %p160, %p161
      %p164 = scmp.ne.s32.totalorder %s147, %s163
      %p165 = scmp.eq.s32.totalorder %s24, 0
      %p166 = por %p164, %p165
      %p167 = scmp.le.s32.totalorder 1, %s18
      %p168 = scmp.lt.s32.totalorder %s18, 3
      %p169 = pnand %p167, %p168
      %p170 = pneg %p169
      // Predicated region
      $region9: #{tpu_custom_call.1} parent=5 // pred_check
        _
      $region10: #{tpu_custom_call.1} parent=5 // pred_check_branch
        %172 = sbr.rel (%p169) target = $region12
      $region11: #{tpu_custom_call.1} parent=5 // pred_region
        %s173 = ssub.s32 %s18, 1
        // Predicated region
        $region13: #{tpu_custom_call.1} parent=11 // pred_check
          %p174 = pneg %p91
        $region14: #{tpu_custom_call.1} parent=11 // pred_check_branch
          %176 = sbr.rel (%p174) target = $region16
        $region15: #{tpu_custom_call.1} parent=11 // pred_region
          %s178 = ssub.s32 2048, 2048
          %179 = vsyncadd [#allocation6], %s178
          %s180 = sshll.u32 [#allocation5], 4
          %s181 = int_to_ptr.vmem [resolvable:$true] %s180
          %186 = dma.hbm_to_vmem [thread:$0]  %s2, 2048, %s181, [#allocation6], 128, 128, 8
        $region16: #{tpu_custom_call.1} parent=11 // pred_fallthru
          _
        // Predicated region
        $region17: #{tpu_custom_call.1} parent=11 // pred_check
          %p187 = pneg %p112
        $region18: #{tpu_custom_call.1} parent=11 // pred_check_branch
          %189 = sbr.rel (%p187) target = $region20
        $region19: #{tpu_custom_call.1} parent=11 // pred_region
          _
        $region20: #{tpu_custom_call.1} parent=11 // pred_fallthru
          _
        // Predicated region
        $region21: #{tpu_custom_call.1} parent=11 // pred_check
          %p190 = pneg %p133
        $region22: #{tpu_custom_call.1} parent=11 // pred_check_branch
          %192 = sbr.rel (%p190) target = $region24
        $region23: #{tpu_custom_call.1} parent=11 // pred_region
          _
        $region24: #{tpu_custom_call.1} parent=11 // pred_fallthru
          _
      $region12: #{tpu_custom_call.1} parent=5 // pred_fallthru
        _
      %p193 = scmp.lt.s32.totalorder %s18, 2
      // Predicated region
      $region25: #{tpu_custom_call.1} parent=5 // pred_check
        %p194 = pneg %p193
      $region26: #{tpu_custom_call.1} parent=5 // pred_check_branch
        %196 = sbr.rel (%p194) target = $region28
      $region27: #{tpu_custom_call.1} parent=5 // pred_region
        // Predicated region
        $region29: #{tpu_custom_call.1} parent=27 // pred_check
          %p197 = pneg %p38
        $region30: #{tpu_custom_call.1} parent=27 // pred_check_branch
          %199 = sbr.rel (%p197) target = $region32
        $region31: #{tpu_custom_call.1} parent=27 // pred_region
          %s200 = sand.u32 %s28, 1
          %s201 = scalar_lea.sflag [#allocation3], %s200
          %s202 = sand.u32 %s28, 1
          %s203 = smul.addr %s202, 128
          %s204 = scalar_lea.vmem [#allocation2], %s203
          %s205 = smul.u32 16, %s18
          %s207 = ssub.s32 2048, 2048
          %208 = vsyncadd %s201, %s207
          %s209 = smul.addr %s205, 128
          %s210 = scalar_lea.hbm %s0, %s209
          %s211 = sshll.u32 %s204, 4
          %s212 = int_to_ptr.vmem [resolvable:$true] %s211
          %217 = dma.hbm_to_vmem [thread:$0]  %s210, 2048, %s212, %s201, 128, 128, 8
        $region32: #{tpu_custom_call.1} parent=27 // pred_fallthru
          _
        // Predicated region
        $region33: #{tpu_custom_call.1} parent=27 // pred_check
          %p218 = pneg %p64
        $region34: #{tpu_custom_call.1} parent=27 // pred_check_branch
          %220 = sbr.rel (%p218) target = $region36
        $region35: #{tpu_custom_call.1} parent=27 // pred_region
          %s221 = smul.u32 2, %s18
          %p222 = scmp.lt.s32.totalorder %s221, 3
          %s223 = scalar_select %p222, %s221, 3
          %s224 = smul.addr %s223, 8
          %s225 = scalar_lea.vmem %s1, %s224
          %s226 = smul.u32 2, %s18
        $region36: #{tpu_custom_call.1} parent=27 // pred_fallthru
          _
      $region28: #{tpu_custom_call.1} parent=5 // pred_fallthru
        _
      %p227 = scmp.le.s32.totalorder 1, %s18
      %p228 = scmp.lt.s32.totalorder %s18, 3
      %p229 = pnand %p227, %p228
      %p230 = pneg %p229
      // Predicated region
      $region37: #{tpu_custom_call.1} parent=5 // pred_check
        _
      $region38: #{tpu_custom_call.1} parent=5 // pred_check_branch
        %232 = sbr.rel (%p229) target = $region40
      $region39: #{tpu_custom_call.1} parent=5 // pred_region
        %s233 = ssub.s32 %s18, 1
        %s234 = sand.u32 %s31, 1
        %s235 = scalar_lea.sflag [#allocation3], %s234
        %s236 = sand.u32 %s31, 1
        %s237 = smul.addr %s236, 128
        %s238 = scalar_lea.vmem [#allocation2], %s237
        // Predicated region
        $region41: #{tpu_custom_call.1} parent=39 // pred_check
          %p239 = pneg %p44
        $region42: #{tpu_custom_call.1} parent=39 // pred_check_branch
          %241 = sbr.rel (%p239) target = $region44
        $region43: #{tpu_custom_call.1} parent=39 // pred_region
          %242 = dma.done %s235, 2048
        $region44: #{tpu_custom_call.1} parent=39 // pred_fallthru
          _
        // Predicated region
        $region45: #{tpu_custom_call.1} parent=39 // pred_check
          %p243 = pneg %p91
        $region46: #{tpu_custom_call.1} parent=39 // pred_check_branch
          %245 = sbr.rel (%p243) target = $region48
        $region47: #{tpu_custom_call.1} parent=39 // pred_region
          %246 = dma.done [#allocation6], 2048
        $region48: #{tpu_custom_call.1} parent=39 // pred_fallthru
          _
        %s247 = sand.u32 %s31, 1
        %s248 = scalar_lea.sflag [#allocation3], %s247
        %s249 = sand.u32 %s31, 1
        %s250 = smul.addr %s249, 128
        %s251 = scalar_lea.vmem [#allocation2], %s250
        %p252 = pneg %p44
        %p253 = pneg %p41
        %s254 = smul.u32 2, %s23
        %p255 = scmp.lt.s32.totalorder %s254, 3
        %s256 = scalar_select %p255, %s254, 3
        %s257 = smul.addr %s256, 8
        %s258 = scalar_lea.vmem %s1, %s257
        %p259 = pneg %p70
        %p260 = pneg %p67
        %p261 = pneg %p91
        %p262 = pneg %p88
        %p263 = pneg %p112
        %p264 = pneg %p109
        %p265 = pneg %p133
        %p266 = pneg %p130
        %p267 = pneg %p159
        %p268 = pneg %p156
        %s269 = sand.u32 %s146, 1
        %s270 = scalar_lea.sflag [#allocation4], %s269
        %s271 = sand.u32 %s146, 1
        %s272 = smul.addr %s271, 16
        %s273 = scalar_lea.vmem [#allocation7], %s272
        %s274 = smul.u32 16, %s23
        %s275 = smul.u32 2, %s23
        %p276 = scmp.lt.s32.totalorder %s275, 3
        %s277 = scalar_select %p276, %s275, 3
        %s278 = smul.addr %s277, 8
        %s279 = scalar_lea.vmem %s1, %s278
        %s280 = smul.u32 2, %s23
        %s281 = smul.u32 2, %s23
        %v282 = vld [vmem:[%s238] sm:$0xff]
        %v283 = vld [vmem:[%s238 + $0x8] sm:$0xff]
        %v284 = vld [vmem:[%s238 + $0x10] sm:$0xff]
        %v285 = vld [vmem:[%s238 + $0x18] sm:$0xff]
        %v286 = vld [vmem:[%s238 + $0x20] sm:$0xff]
        %v287 = vld [vmem:[%s238 + $0x28] sm:$0xff]
        %v288 = vld [vmem:[%s238 + $0x30] sm:$0xff]
        %v289 = vld [vmem:[%s238 + $0x38] sm:$0xff]
        %v290 = vld [vmem:[%s238 + $0x40] sm:$0xff]
        %v291 = vld [vmem:[%s238 + $0x48] sm:$0xff]
        %v292 = vld [vmem:[%s238 + $0x50] sm:$0xff]
        %v293 = vld [vmem:[%s238 + $0x58] sm:$0xff]
        %v294 = vld [vmem:[%s238 + $0x60] sm:$0xff]
        %v295 = vld [vmem:[%s238 + $0x68] sm:$0xff]
        %v296 = vld [vmem:[%s238 + $0x70] sm:$0xff]
        %v297 = vld [vmem:[%s238 + $0x78] sm:$0xff]
        %v298 = vld [vmem:[#allocation5] sm:$0xff]
        %v299 = vld [vmem:[#allocation5 + $0x8] sm:$0xff]
        %v300 = vld [vmem:[#allocation5 + $0x10] sm:$0xff]
        %v301 = vld [vmem:[#allocation5 + $0x18] sm:$0xff]
        %v302 = vld [vmem:[#allocation5 + $0x20] sm:$0xff]
        %v303 = vld [vmem:[#allocation5 + $0x28] sm:$0xff]
        %v304 = vld [vmem:[#allocation5 + $0x30] sm:$0xff]
        %v305 = vld [vmem:[#allocation5 + $0x38] sm:$0xff]
        %v306 = vld [vmem:[#allocation5 + $0x40] sm:$0xff]
        %v307 = vld [vmem:[#allocation5 + $0x48] sm:$0xff]
        %v308 = vld [vmem:[#allocation5 + $0x50] sm:$0xff]
        %v309 = vld [vmem:[#allocation5 + $0x58] sm:$0xff]
        %v310 = vld [vmem:[#allocation5 + $0x60] sm:$0xff]
        %v311 = vld [vmem:[#allocation5 + $0x68] sm:$0xff]
        %v312 = vld [vmem:[#allocation5 + $0x70] sm:$0xff]
        %v313 = vld [vmem:[#allocation5 + $0x78] sm:$0xff]
        %v314 = vld [vmem:[%s3] sm:$0x1]
        %v316 = vlaneseq
        %v317 = vshrl.u32 %v316, 7
        %v318 = vsub.s32 0, %v317
        %v319 = vrot.slane %v314, %v318
        %321 = vmatprep.subr.mxu0 0.0
        %322 = vmatpush1.msra.mxu0 %v298
        %323 = vmatprep.subr.mxu0 0.0
        %324 = vmatpush1.msra.mxu0 %v299
        %325 = vmatprep.subr.mxu0 0.0
        %326 = vmatpush1.msra.mxu0 %v300
        %327 = vmatprep.subr.mxu0 0.0
        %328 = vmatpush1.msra.mxu0 %v301
        %329 = vmatprep.subr.mxu0 0.0
        %330 = vmatpush1.msra.mxu0 %v302
        %331 = vmatprep.subr.mxu0 0.0
        %332 = vmatpush1.msra.mxu0 %v303
        %333 = vmatprep.subr.mxu0 0.0
        %334 = vmatpush1.msra.mxu0 %v304
        %335 = vmatprep.subr.mxu0 0.0
        %336 = vmatpush1.msra.mxu0 %v305
        %337 = vmatprep.subr.mxu0 0.0
        %338 = vmatpush1.msra.mxu0 %v306
        %339 = vmatprep.subr.mxu0 0.0
        %340 = vmatpush1.msra.mxu0 %v307
        %341 = vmatprep.subr.mxu0 0.0
        %342 = vmatpush1.msra.mxu0 %v308
        %343 = vmatprep.subr.mxu0 0.0
        %344 = vmatpush1.msra.mxu0 %v309
        %345 = vmatprep.subr.mxu0 0.0
        %346 = vmatpush1.msra.mxu0 %v310
        %347 = vmatprep.subr.mxu0 0.0
        %348 = vmatpush1.msra.mxu0 %v311
        %349 = vmatprep.subr.mxu0 0.0
        %350 = vmatpush1.msra.mxu0 %v312
        %351 = vmatprep.subr.mxu0 0.0
        %352 = vmatpush1.msra.mxu0 %v313
        %353 = vmatprep.subr.mxu0 0.0
        %354 = vmatpush1.msra.mxu0 0.0
        %355 = vmatprep.subr.mxu0 0.0
        %356 = vmatpush1.msra.mxu0 0.0
        %357 = vmatprep.subr.mxu0 0.0
        %358 = vmatpush1.msra.mxu0 0.0
        %359 = vmatprep.subr.mxu0 0.0
        %360 = vmatpush1.msra.mxu0 0.0
        %361 = vmatprep.subr.mxu0 0.0
        %362 = vmatpush1.msra.mxu0 0.0
        %363 = vmatprep.subr.mxu0 0.0
        %364 = vmatpush1.msra.mxu0 0.0
        %365 = vmatprep.subr.mxu0 0.0
        %366 = vmatpush1.msra.mxu0 0.0
        %367 = vmatprep.subr.mxu0 0.0
        %368 = vmatpush1.msra.mxu0 0.0
        %369 = vmatprep.subr.mxu0 0.0
        %370 = vmatpush1.msra.mxu0 0.0
        %371 = vmatprep.subr.mxu0 0.0
        %372 = vmatpush1.msra.mxu0 0.0
        %373 = vmatprep.subr.mxu0 0.0
        %374 = vmatpush1.msra.mxu0 0.0
        %375 = vmatprep.subr.mxu0 0.0
        %376 = vmatpush1.msra.mxu0 0.0
        %377 = vmatprep.subr.mxu0 0.0
        %378 = vmatpush1.msra.mxu0 0.0
        %379 = vmatprep.subr.mxu0 0.0
        %380 = vmatpush1.msra.mxu0 0.0
        %381 = vmatprep.subr.mxu0 0.0
        %382 = vmatpush1.msra.mxu0 0.0
        %383 = vmatprep.subr.mxu0 0.0
        %384 = vmatpush1.msra.mxu0 0.0
        %385 = vmatprep.mubr.f32.mxu0 0.0
        %386 = vmatmul.mubr.f32.gmra.mrb[0].mxu0 %v282
        %v387 = vpop.f32.mrb[0].mxu0
        %v388 = vadd.f32 %v319, %v387
        %v389 = vpop.f32.mrb[0].mxu0
        %390 = vmatprep.mubr.f32.mxu0 0.0
        %391 = vmatmul.mubr.f32.gmra.mrb[0].mxu0 %v283
        %v392 = vpop.f32.mrb[0].mxu0
        %v393 = vadd.f32 %v319, %v392
        %v394 = vpop.f32.mrb[0].mxu0
        %395 = vmatprep.mubr.f32.mxu0 0.0
        %396 = vmatmul.mubr.f32.gmra.mrb[0].mxu0 %v284
        %v397 = vpop.f32.mrb[0].mxu0
        %v398 = vadd.f32 %v319, %v397
        %v399 = vpop.f32.mrb[0].mxu0
        %400 = vmatprep.mubr.f32.mxu0 0.0
        %401 = vmatmul.mubr.f32.gmra.mrb[0].mxu0 %v285
        %v402 = vpop.f32.mrb[0].mxu0
        %v403 = vadd.f32 %v319, %v402
        %v404 = vpop.f32.mrb[0].mxu0
        %405 = vmatprep.mubr.f32.mxu0 0.0
        %406 = vmatmul.mubr.f32.gmra.mrb[0].mxu0 %v286
        %v407 = vpop.f32.mrb[0].mxu0
        %v408 = vadd.f32 %v319, %v407
        %v409 = vpop.f32.mrb[0].mxu0
        %410 = vmatprep.mubr.f32.mxu0 0.0
        %411 = vmatmul.mubr.f32.gmra.mrb[0].mxu0 %v287
        %v412 = vpop.f32.mrb[0].mxu0
        %v413 = vadd.f32 %v319, %v412
        %v414 = vpop.f32.mrb[0].mxu0
        %415 = vmatprep.mubr.f32.mxu0 0.0
        %416 = vmatmul.mubr.f32.gmra.mrb[0].mxu0 %v288
        %v417 = vpop.f32.mrb[0].mxu0
        %v418 = vadd.f32 %v319, %v417
        %v419 = vpop.f32.mrb[0].mxu0
        %420 = vmatprep.mubr.f32.mxu0 0.0
        %421 = vmatmul.mubr.f32.gmra.mrb[0].mxu0 %v289
        %v422 = vpop.f32.mrb[0].mxu0
        %v423 = vadd.f32 %v319, %v422
        %v424 = vpop.f32.mrb[0].mxu0
        %425 = vmatprep.mubr.f32.mxu0 0.0
        %426 = vmatmul.mubr.f32.gmra.mrb[0].mxu0 %v290
        %v427 = vpop.f32.mrb[0].mxu0
        %v428 = vadd.f32 %v319, %v427
        %v429 = vpop.f32.mrb[0].mxu0
        %430 = vmatprep.mubr.f32.mxu0 0.0
        %431 = vmatmul.mubr.f32.gmra.mrb[0].mxu0 %v291
        %v432 = vpop.f32.mrb[0].mxu0
        %v433 = vadd.f32 %v319, %v432
        %v434 = vpop.f32.mrb[0].mxu0
        %435 = vmatprep.mubr.f32.mxu0 0.0
        %436 = vmatmul.mubr.f32.gmra.mrb[0].mxu0 %v292
        %v437 = vpop.f32.mrb[0].mxu0
        %v438 = vadd.f32 %v319, %v437
        %v439 = vpop.f32.mrb[0].mxu0
        %440 = vmatprep.mubr.f32.mxu0 0.0
        %441 = vmatmul.mubr.f32.gmra.mrb[0].mxu0 %v293
        %v442 = vpop.f32.mrb[0].mxu0
        %v443 = vadd.f32 %v319, %v442
        %v444 = vpop.f32.mrb[0].mxu0
        %445 = vmatprep.mubr.f32.mxu0 0.0
        %446 = vmatmul.mubr.f32.gmra.mrb[0].mxu0 %v294
        %v447 = vpop.f32.mrb[0].mxu0
        %v448 = vadd.f32 %v319, %v447
        %v449 = vpop.f32.mrb[0].mxu0
        %450 = vmatprep.mubr.f32.mxu0 0.0
        %451 = vmatmul.mubr.f32.gmra.mrb[0].mxu0 %v295
        %v452 = vpop.f32.mrb[0].mxu0
        %v453 = vadd.f32 %v319, %v452
        %v454 = vpop.f32.mrb[0].mxu0
        %455 = vmatprep.mubr.f32.mxu0 0.0
        %456 = vmatmul.mubr.f32.gmra.mrb[0].mxu0 %v296
        %v457 = vpop.f32.mrb[0].mxu0
        %v458 = vadd.f32 %v319, %v457
        %v459 = vpop.f32.mrb[0].mxu0
        %460 = vmatprep.mubr.f32.mxu0 0.0
        %461 = vmatmul.mubr.f32.gmra.mrb[0].mxu0 %v297
        %v462 = vpop.f32.mrb[0].mxu0
        %v463 = vadd.f32 %v319, %v462
        %v464 = vpop.f32.mrb[0].mxu0
        %465 = vdwg.mxu0
        %v466 = vtanh.pop %v388
        %v467 = vtanh.pop %v393
        %v468 = vtanh.pop %v398
        %v469 = vtanh.pop %v403
        %v470 = vtanh.pop %v408
        %v471 = vtanh.pop %v413
        %v472 = vtanh.pop %v418
        %v473 = vtanh.pop %v423
        %v474 = vtanh.pop %v428
        %v475 = vtanh.pop %v433
        %v476 = vtanh.pop %v438
        %v477 = vtanh.pop %v443
        %v478 = vtanh.pop %v448
        %v479 = vtanh.pop %v453
        %v480 = vtanh.pop %v458
        %v481 = vtanh.pop %v463
        %v482 = vld [vmem:[%s4] sm:$0x1]
        %v484 = vlaneseq
        %v485 = vshrl.u32 %v484, 7
        %v486 = vsub.s32 0, %v485
        %v487 = vrot.slane %v482, %v486
        %v489 = vmul.f32 %v466, %v487
        %v490 = vmul.f32 %v467, %v487
        %v491 = vmul.f32 %v468, %v487
        %v492 = vmul.f32 %v469, %v487
        %v493 = vmul.f32 %v470, %v487
        %v494 = vmul.f32 %v471, %v487
        %v495 = vmul.f32 %v472, %v487
        %v496 = vmul.f32 %v473, %v487
        %v497 = vmul.f32 %v474, %v487
        %v498 = vmul.f32 %v475, %v487
        %v499 = vmul.f32 %v476, %v487
        %v500 = vmul.f32 %v477, %v487
        %v501 = vmul.f32 %v478, %v487
        %v502 = vmul.f32 %v479, %v487
        %v503 = vmul.f32 %v480, %v487
        %v504 = vmul.f32 %v481, %v487
        %505 = vadd.xlane.f32.xlu0 %v489
        %v506 = vpop.xlane.xlu0 %505
        %507 = vadd.xlane.f32.xlu0 %v490
        %v508 = vpop.xlane.xlu0 %507
        %509 = vadd.xlane.f32.xlu0 %v491
        %v510 = vpop.xlane.xlu0 %509
        %511 = vadd.xlane.f32.xlu0 %v492
        %v512 = vpop.xlane.xlu0 %511
        %513 = vadd.xlane.f32.xlu0 %v493
        %v514 = vpop.xlane.xlu0 %513
        %515 = vadd.xlane.f32.xlu0 %v494
        %v516 = vpop.xlane.xlu0 %515
        %517 = vadd.xlane.f32.xlu0 %v495
        %v518 = vpop.xlane.xlu0 %517
        %519 = vadd.xlane.f32.xlu0 %v496
        %v520 = vpop.xlane.xlu0 %519
        %521 = vadd.xlane.f32.xlu0 %v497
        %v522 = vpop.xlane.xlu0 %521
        %523 = vadd.xlane.f32.xlu0 %v498
        %v524 = vpop.xlane.xlu0 %523
        %525 = vadd.xlane.f32.xlu0 %v499
        %v526 = vpop.xlane.xlu0 %525
        %527 = vadd.xlane.f32.xlu0 %v500
        %v528 = vpop.xlane.xlu0 %527
        %529 = vadd.xlane.f32.xlu0 %v501
        %v530 = vpop.xlane.xlu0 %529
        %531 = vadd.xlane.f32.xlu0 %v502
        %v532 = vpop.xlane.xlu0 %531
        %533 = vadd.xlane.f32.xlu0 %v503
        %v534 = vpop.xlane.xlu0 %533
        %535 = vadd.xlane.f32.xlu0 %v504
        %v536 = vpop.xlane.xlu0 %535
        %v537 = vlaneseq
        %v538 = vand.u32 %v537, 127
        %v539 = vld [vmem:[%s279] sm:$0xff]
        %v540 = vld [vmem:[%s279 + $0x8] sm:$0xff]
        %541 = vset.pattern.permute.xlu0 0
        %542 = vperm.xlu0 %541, %v539
        %v543 = vpop.permute.xlu0 %542
        %544 = vset.pattern.permute.xlu0 0
        %545 = vperm.xlu0 %544, %v540
        %v546 = vpop.permute.xlu0 %545
        %vm547 = vcmp.lt.s32.totalorder %v538, %v543
        %vm548 = vcmp.lt.s32.totalorder %v538, %v546
        %v565 = vlaneseq
        %v566 = vshrl.u32 %v565, 7
        %v567 = vsub.s32 %v538, %v566
        %v568 = vrot.slane %v506, %v567
        %v569 = vlaneseq
        %v570 = vshrl.u32 %v569, 7
        %v571 = vsub.s32 %v538, %v570
        %v572 = vrot.slane %v508, %v571
        %v573 = vlaneseq
        %v574 = vshrl.u32 %v573, 7
        %v575 = vsub.s32 %v538, %v574
        %v576 = vrot.slane %v510, %v575
        %v577 = vlaneseq
        %v578 = vshrl.u32 %v577, 7
        %v579 = vsub.s32 %v538, %v578
        %v580 = vrot.slane %v512, %v579
        %v581 = vlaneseq
        %v582 = vshrl.u32 %v581, 7
        %v583 = vsub.s32 %v538, %v582
        %v584 = vrot.slane %v514, %v583
        %v585 = vlaneseq
        %v586 = vshrl.u32 %v585, 7
        %v587 = vsub.s32 %v538, %v586
        %v588 = vrot.slane %v516, %v587
        %v589 = vlaneseq
        %v590 = vshrl.u32 %v589, 7
        %v591 = vsub.s32 %v538, %v590
        %v592 = vrot.slane %v518, %v591
        %v593 = vlaneseq
        %v594 = vshrl.u32 %v593, 7
        %v595 = vsub.s32 %v538, %v594
        %v596 = vrot.slane %v520, %v595
        %v597 = vlaneseq
        %v598 = vshrl.u32 %v597, 7
        %v599 = vsub.s32 %v538, %v598
        %v600 = vrot.slane %v522, %v599
        %v601 = vlaneseq
        %v602 = vshrl.u32 %v601, 7
        %v603 = vsub.s32 %v538, %v602
        %v604 = vrot.slane %v524, %v603
        %v605 = vlaneseq
        %v606 = vshrl.u32 %v605, 7
        %v607 = vsub.s32 %v538, %v606
        %v608 = vrot.slane %v526, %v607
        %v609 = vlaneseq
        %v610 = vshrl.u32 %v609, 7
        %v611 = vsub.s32 %v538, %v610
        %v612 = vrot.slane %v528, %v611
        %v613 = vlaneseq
        %v614 = vshrl.u32 %v613, 7
        %v615 = vsub.s32 %v538, %v614
        %v616 = vrot.slane %v530, %v615
        %v617 = vlaneseq
        %v618 = vshrl.u32 %v617, 7
        %v619 = vsub.s32 %v538, %v618
        %v620 = vrot.slane %v532, %v619
        %v621 = vlaneseq
        %v622 = vshrl.u32 %v621, 7
        %v623 = vsub.s32 %v538, %v622
        %v624 = vrot.slane %v534, %v623
        %v625 = vlaneseq
        %v626 = vshrl.u32 %v625, 7
        %v627 = vsub.s32 %v538, %v626
        %v628 = vrot.slane %v536, %v627
        %vm629 = vcmask 1041409
        %v630 = vsel %vm629, %v572, %v568
        %vm631 = vcmask 1042434
        %v632 = vsel %vm631, %v576, %v630
        %vm633 = vcmask 1043459
        %v634 = vsel %vm633, %v580, %v632
        %vm635 = vcmask 1044484
        %v636 = vsel %vm635, %v584, %v634
        %vm637 = vcmask 1045509
        %v638 = vsel %vm637, %v588, %v636
        %vm639 = vcmask 1046534
        %v640 = vsel %vm639, %v592, %v638
        %vm641 = vcmask 1047559
        %v642 = vsel %vm641, %v596, %v640
        %v643 = vsel %vm629, %v604, %v600
        %v644 = vsel %vm631, %v608, %v643
        %v645 = vsel %vm633, %v612, %v644
        %v646 = vsel %vm635, %v616, %v645
        %v647 = vsel %vm637, %v620, %v646
        %v648 = vsel %vm639, %v624, %v647
        %v649 = vsel %vm641, %v628, %v648
        %v652 = vsel %vm547, %v642, -1e+20
        %v653 = vsel %vm548, %v649, -1e+20
        %vm654 = vcmask 64512
        %v655 = vsel %vm654, %v652, -inf
        %656 = vmax.xlane.f32.xlu0 %v655
        %v657 = vpop.xlane.xlu0 %656
        %v658 = vsel %vm654, %v653, -inf
        %659 = vmax.xlane.f32.xlu0 %v658
        %v660 = vpop.xlane.xlu0 %659
        %v661 = vsub.f32 %v652, %v657
        %v662 = vsub.f32 %v653, %v660
        %v663 = vmul.f32 %v661, 1.442695
        %v664 = vpow.pop %v663
        %v665 = vmul.f32 %v662, 1.442695
        %v666 = vpow.pop %v665
        %v667 = vsel %vm654, %v664, 0.0
        %668 = vadd.xlane.f32.xlu0 %v667
        %v669 = vpop.xlane.xlu0 %668
        %v670 = vsel %vm654, %v666, 0.0
        %671 = vadd.xlane.f32.xlu0 %v670
        %v672 = vpop.xlane.xlu0 %671
        %v673 = vrcp.pop %v669
        %v674 = vrcp.pop %v672
        %v675 = vmul.f32 %v664, %v673
        %v676 = vmul.f32 %v666, %v674
        %v677 = vlaneseq
        %v678 = vshrl.u32 %v677, 7
        %v679 = vsub.s32 0, %v678
        %v680 = vrot.slane %v675, %v679
        %682 = vbcast.lane.b32.xlu0 %v680, 256
        %v683 = vpop.permute.xlu0 %682
        %v684 = vlaneseq
        %v685 = vshrl.u32 %v684, 7
        %v686 = vsub.s32 1, %v685
        %v687 = vrot.slane %v675, %v686
        %689 = vbcast.lane.b32.xlu0 %v687, 256
        %v690 = vpop.permute.xlu0 %689
        %v691 = vlaneseq
        %v692 = vshrl.u32 %v691, 7
        %v693 = vsub.s32 2, %v692
        %v694 = vrot.slane %v675, %v693
        %696 = vbcast.lane.b32.xlu0 %v694, 256
        %v697 = vpop.permute.xlu0 %696
        %v698 = vlaneseq
        %v699 = vshrl.u32 %v698, 7
        %v700 = vsub.s32 3, %v699
        %v701 = vrot.slane %v675, %v700
        %703 = vbcast.lane.b32.xlu0 %v701, 256
        %v704 = vpop.permute.xlu0 %703
        %v705 = vlaneseq
        %v706 = vshrl.u32 %v705, 7
        %v707 = vsub.s32 4, %v706
        %v708 = vrot.slane %v675, %v707
        %710 = vbcast.lane.b32.xlu0 %v708, 256
        %v711 = vpop.permute.xlu0 %710
        %v712 = vlaneseq
        %v713 = vshrl.u32 %v712, 7
        %v714 = vsub.s32 5, %v713
        %v715 = vrot.slane %v675, %v714
        %717 = vbcast.lane.b32.xlu0 %v715, 256
        %v718 = vpop.permute.xlu0 %717
        %v719 = vlaneseq
        %v720 = vshrl.u32 %v719, 7
        %v721 = vsub.s32 6, %v720
        %v722 = vrot.slane %v675, %v721
        %724 = vbcast.lane.b32.xlu0 %v722, 256
        %v725 = vpop.permute.xlu0 %724
        %v726 = vlaneseq
        %v727 = vshrl.u32 %v726, 7
        %v728 = vsub.s32 7, %v727
        %v729 = vrot.slane %v675, %v728
        %731 = vbcast.lane.b32.xlu0 %v729, 256
        %v732 = vpop.permute.xlu0 %731
        %v733 = vlaneseq
        %v734 = vshrl.u32 %v733, 7
        %v735 = vsub.s32 0, %v734
        %v736 = vrot.slane %v676, %v735
        %738 = vbcast.lane.b32.xlu0 %v736, 256
        %v739 = vpop.permute.xlu0 %738
        %v740 = vlaneseq
        %v741 = vshrl.u32 %v740, 7
        %v742 = vsub.s32 1, %v741
        %v743 = vrot.slane %v676, %v742
        %745 = vbcast.lane.b32.xlu0 %v743, 256
        %v746 = vpop.permute.xlu0 %745
        %v747 = vlaneseq
        %v748 = vshrl.u32 %v747, 7
        %v749 = vsub.s32 2, %v748
        %v750 = vrot.slane %v676, %v749
        %752 = vbcast.lane.b32.xlu0 %v750, 256
        %v753 = vpop.permute.xlu0 %752
        %v754 = vlaneseq
        %v755 = vshrl.u32 %v754, 7
        %v756 = vsub.s32 3, %v755
        %v757 = vrot.slane %v676, %v756
        %759 = vbcast.lane.b32.xlu0 %v757, 256
        %v760 = vpop.permute.xlu0 %759
        %v761 = vlaneseq
        %v762 = vshrl.u32 %v761, 7
        %v763 = vsub.s32 4, %v762
        %v764 = vrot.slane %v676, %v763
        %766 = vbcast.lane.b32.xlu0 %v764, 256
        %v767 = vpop.permute.xlu0 %766
        %v768 = vlaneseq
        %v769 = vshrl.u32 %v768, 7
        %v770 = vsub.s32 5, %v769
        %v771 = vrot.slane %v676, %v770
        %773 = vbcast.lane.b32.xlu0 %v771, 256
        %v774 = vpop.permute.xlu0 %773
        %v775 = vlaneseq
        %v776 = vshrl.u32 %v775, 7
        %v777 = vsub.s32 6, %v776
        %v778 = vrot.slane %v676, %v777
        %780 = vbcast.lane.b32.xlu0 %v778, 256
        %v781 = vpop.permute.xlu0 %780
        %v782 = vlaneseq
        %v783 = vshrl.u32 %v782, 7
        %v784 = vsub.s32 7, %v783
        %v785 = vrot.slane %v676, %v784
        %787 = vbcast.lane.b32.xlu0 %v785, 256
        %v788 = vpop.permute.xlu0 %787
        %v789 = vmul.f32 %v683, %v282
        %v790 = vmul.f32 %v690, %v283
        %v791 = vmul.f32 %v697, %v284
        %v792 = vmul.f32 %v704, %v285
        %v793 = vmul.f32 %v711, %v286
        %v794 = vmul.f32 %v718, %v287
        %v795 = vmul.f32 %v725, %v288
        %v796 = vmul.f32 %v732, %v289
        %v797 = vmul.f32 %v739, %v290
        %v798 = vmul.f32 %v746, %v291
        %v799 = vmul.f32 %v753, %v292
        %v800 = vmul.f32 %v760, %v293
        %v801 = vmul.f32 %v767, %v294
        %v802 = vmul.f32 %v774, %v295
        %v803 = vmul.f32 %v781, %v296
        %v804 = vmul.f32 %v788, %v297
        %v805 = vrot.slane %v789, 4
        %v806 = vadd.f32 %v789, %v805
        %v807 = vrot.slane %v806, 2
        %v808 = vadd.f32 %v806, %v807
        %v809 = vrot.slane %v808, 1
        %v810 = vadd.f32 %v808, %v809
        %v811 = vrot.slane %v790, 4
        %v812 = vadd.f32 %v790, %v811
        %v813 = vrot.slane %v812, 2
        %v814 = vadd.f32 %v812, %v813
        %v815 = vrot.slane %v814, 1
        %v816 = vadd.f32 %v814, %v815
        %v817 = vrot.slane %v791, 4
        %v818 = vadd.f32 %v791, %v817
        %v819 = vrot.slane %v818, 2
        %v820 = vadd.f32 %v818, %v819
        %v821 = vrot.slane %v820, 1
        %v822 = vadd.f32 %v820, %v821
        %v823 = vrot.slane %v792, 4
        %v824 = vadd.f32 %v792, %v823
        %v825 = vrot.slane %v824, 2
        %v826 = vadd.f32 %v824, %v825
        %v827 = vrot.slane %v826, 1
        %v828 = vadd.f32 %v826, %v827
        %v829 = vrot.slane %v793, 4
        %v830 = vadd.f32 %v793, %v829
        %v831 = vrot.slane %v830, 2
        %v832 = vadd.f32 %v830, %v831
        %v833 = vrot.slane %v832, 1
        %v834 = vadd.f32 %v832, %v833
        %v835 = vrot.slane %v794, 4
        %v836 = vadd.f32 %v794, %v835
        %v837 = vrot.slane %v836, 2
        %v838 = vadd.f32 %v836, %v837
        %v839 = vrot.slane %v838, 1
        %v840 = vadd.f32 %v838, %v839
        %v841 = vrot.slane %v795, 4
        %v842 = vadd.f32 %v795, %v841
        %v843 = vrot.slane %v842, 2
        %v844 = vadd.f32 %v842, %v843
        %v845 = vrot.slane %v844, 1
        %v846 = vadd.f32 %v844, %v845
        %v847 = vrot.slane %v796, 4
        %v848 = vadd.f32 %v796, %v847
        %v849 = vrot.slane %v848, 2
        %v850 = vadd.f32 %v848, %v849
        %v851 = vrot.slane %v850, 1
        %v852 = vadd.f32 %v850, %v851
        %v853 = vrot.slane %v797, 4
        %v854 = vadd.f32 %v797, %v853
        %v855 = vrot.slane %v854, 2
        %v856 = vadd.f32 %v854, %v855
        %v857 = vrot.slane %v856, 1
        %v858 = vadd.f32 %v856, %v857
        %v859 = vrot.slane %v798, 4
        %v860 = vadd.f32 %v798, %v859
        %v861 = vrot.slane %v860, 2
        %v862 = vadd.f32 %v860, %v861
        %v863 = vrot.slane %v862, 1
        %v864 = vadd.f32 %v862, %v863
        %v865 = vrot.slane %v799, 4
        %v866 = vadd.f32 %v799, %v865
        %v867 = vrot.slane %v866, 2
        %v868 = vadd.f32 %v866, %v867
        %v869 = vrot.slane %v868, 1
        %v870 = vadd.f32 %v868, %v869
        %v871 = vrot.slane %v800, 4
        %v872 = vadd.f32 %v800, %v871
        %v873 = vrot.slane %v872, 2
        %v874 = vadd.f32 %v872, %v873
        %v875 = vrot.slane %v874, 1
        %v876 = vadd.f32 %v874, %v875
        %v877 = vrot.slane %v801, 4
        %v878 = vadd.f32 %v801, %v877
        %v879 = vrot.slane %v878, 2
        %v880 = vadd.f32 %v878, %v879
        %v881 = vrot.slane %v880, 1
        %v882 = vadd.f32 %v880, %v881
        %v883 = vrot.slane %v802, 4
        %v884 = vadd.f32 %v802, %v883
        %v885 = vrot.slane %v884, 2
        %v886 = vadd.f32 %v884, %v885
        %v887 = vrot.slane %v886, 1
        %v888 = vadd.f32 %v886, %v887
        %v889 = vrot.slane %v803, 4
        %v890 = vadd.f32 %v803, %v889
        %v891 = vrot.slane %v890, 2
        %v892 = vadd.f32 %v890, %v891
        %v893 = vrot.slane %v892, 1
        %v894 = vadd.f32 %v892, %v893
        %v895 = vrot.slane %v804, 4
        %v896 = vadd.f32 %v804, %v895
        %v897 = vrot.slane %v896, 2
        %v898 = vadd.f32 %v896, %v897
        %v899 = vrot.slane %v898, 1
        %v900 = vadd.f32 %v898, %v899
        %v917 = vsel %vm629, %v816, %v810
        %v918 = vsel %vm631, %v822, %v917
        %v919 = vsel %vm633, %v828, %v918
        %v920 = vsel %vm635, %v834, %v919
        %v921 = vsel %vm637, %v840, %v920
        %v922 = vsel %vm639, %v846, %v921
        %v923 = vsel %vm641, %v852, %v922
        %v924 = vsel %vm629, %v864, %v858
        %v925 = vsel %vm631, %v870, %v924
        %v926 = vsel %vm633, %v876, %v925
        %v927 = vsel %vm635, %v882, %v926
        %v928 = vsel %vm637, %v888, %v927
        %v929 = vsel %vm639, %v894, %v928
        %v930 = vsel %vm641, %v900, %v929
        %933 = vst [vmem:[%s273] sm:$0xff] %v923
        %934 = vst [vmem:[%s273 + $0x8] sm:$0xff] %v930
        %s935 = sand.u32 %s146, 1
        %s936 = scalar_lea.sflag [#allocation4], %s935
        %s937 = sand.u32 %s146, 1
        %s938 = smul.addr %s937, 16
        %s939 = scalar_lea.vmem [#allocation7], %s938
        // Predicated region
        $region49: #{tpu_custom_call.1} parent=39 // pred_check
          %p940 = pneg %p156
        $region50: #{tpu_custom_call.1} parent=39 // pred_check_branch
          %942 = sbr.rel (%p940) target = $region52
        $region51: #{tpu_custom_call.1} parent=39 // pred_region
          %s943 = smul.u32 2, %s23
          %s945 = ssub.s32 256, 256
          %946 = vsyncadd %s936, %s945
          %s947 = smul.addr %s943, 128
          %s948 = scalar_lea.hbm %s5, %s947
          %s949 = sshll.u32 %s939, 4
          %s950 = int_to_ptr.vmem [resolvable:$true] %s949
          %955 = dma.vmem_to_hbm [thread:$0]  %s950, 256, %s948, %s936, 128, 128, 8
        $region52: #{tpu_custom_call.1} parent=39 // pred_fallthru
          _
      $region40: #{tpu_custom_call.1} parent=5 // pred_fallthru
        _
      %p956 = scmp.le.s32.totalorder 2, %s18
      // Predicated region
      $region53: #{tpu_custom_call.1} parent=5 // pred_check
        %p957 = pneg %p956
      $region54: #{tpu_custom_call.1} parent=5 // pred_check_branch
        %959 = sbr.rel (%p957) target = $region56
      $region55: #{tpu_custom_call.1} parent=5 // pred_region
        %s960 = ssub.s32 %s18, 2
        // Predicated region
        $region57: #{tpu_custom_call.1} parent=55 // pred_check
          %p961 = pneg %p162
        $region58: #{tpu_custom_call.1} parent=55 // pred_check_branch
          %963 = sbr.rel (%p961) target = $region60
        $region59: #{tpu_custom_call.1} parent=55 // pred_region
          %s964 = sand.u32 %s147, 1
          %s965 = scalar_lea.sflag [#allocation4], %s964
          %s966 = sand.u32 %s147, 1
          %s967 = smul.addr %s966, 16
          %s968 = scalar_lea.vmem [#allocation7], %s967
          %969 = dma.done %s965, 256
        $region60: #{tpu_custom_call.1} parent=55 // pred_fallthru
          _
      $region56: #{tpu_custom_call.1} parent=5 // pred_fallthru
        _
    $region6: #{tpu_custom_call.1} parent=1 // loop_footer
      %s22 = sadd.s32 1, %s18
    $region7: #{tpu_custom_call.1} parent=1 // loop_footer_branch
      %17 = sbr.rel target = $region3
    $region8: #{tpu_custom_call.1} parent=1 // loop_exit
      _
    %970 = vsyncpa [#allocation3], 1
    %s971 = scalar_lea.sflag [#allocation3], 1
    %972 = vsyncpa %s971, 1
    %973 = vsyncpa [#allocation6], 1
    %974 = vsyncpa [#allocation4], 1
    %s975 = scalar_lea.sflag [#allocation4], 1
    %976 = vsyncpa %s975, 1

</llo_original>
